<compile_context>
chip_gen: v6e
topology: v6e:2x2x1
jax: 0.10.0
libtpu: 0.0.40
codegen_flags: <defaults>
</compile_context>

<pallas_src>
import jax
import jax.numpy as jnp
from jax.experimental import pallas as pl
from jax.experimental.pallas import tpu as pltpu

LANE = 1024                       # lane-dense last dim (multiple of 128)
ROW_TILE = 256                    # 256 x 1024 f32 = 1 MiB block (tiled path)
NUM_SLICES = 2                    # leading "parallel" axis of the max reduction
BLOCK_ELEMS = ROW_TILE * LANE     # padding granularity of the tiled path
FUSED_MAX_BYTES = 4 * 1024 * 1024 # whole-array-resident-in-VMEM threshold
VMEM_LIMIT = 32 * 1024 * 1024     # safe on v5e/v6e (128 MiB) and v7x (64 MiB)

VOLUME_MUL_PARAMS = jnp.asarray([0.25, 0.5, 0.75, 0.95], jnp.float32)
VOLUME_AUG_RATE = 0.8


# ---------------------------------------------------------------------------
# Fused kernel: whole (padded) waveform is one VMEM-resident array.
#   read x once -> max|x| -> scale -> write once (in-place).
# ---------------------------------------------------------------------------
def _fused_kernel(x_ref, mul_ref, o_ref):
    x = x_ref[...].astype(jnp.float32)
    max_val = jnp.max(jnp.abs(x))
    # TODO(synk): PyTorch asserts max_val > 0 host-side; here we guard the
    # divide so an all-zero input passes through unchanged.
    safe_max = jnp.where(max_val > 0, max_val, jnp.float32(1.0))
    scale = jnp.where(max_val > 0, mul_ref[0] / safe_max, jnp.float32(1.0))
    o_ref[...] = (x * scale).astype(o_ref.dtype)


def _augment_fused(x, mul_param):
    L = x.shape[0]
    pad = (-L) % (8 * LANE)
    xp = jnp.pad(x, (0, pad)) if pad else x
    x2d = xp.reshape(-1, LANE)
    rows, cols = x2d.shape
    mul_arr = jnp.asarray(mul_param, jnp.float32).reshape((1,))
    y2d = pl.pallas_call(
        _fused_kernel,
        out_shape=jax.ShapeDtypeStruct((rows, cols), x2d.dtype),
        in_specs=[pl.BlockSpec(memory_space=pltpu.MemorySpace.VMEM),
                  pl.BlockSpec(memory_space=pltpu.MemorySpace.SMEM)],
        out_specs=pl.BlockSpec(memory_space=pltpu.MemorySpace.VMEM),
        input_output_aliases={0: 0},        # write back in place
        compiler_params=pltpu.CompilerParams(vmem_limit_bytes=VMEM_LIMIT),
    )(x2d, mul_arr)
    y = y2d.reshape(-1)
    return y[:L] if pad else y


# ---------------------------------------------------------------------------
# Tiled pass 1: max(|x|) folded into a resident (8, LANE) output block per
# slice.  Steady state is VPU-only elementwise maximum across vregs; the tiny
# (NUM_SLICES*8, LANE) partials array is reduced to a scalar outside.
# ---------------------------------------------------------------------------
def _maxabs_kernel(x_ref, o_ref):
    i = pl.program_id(1)

    @pl.when(i == 0)
    def _():
        # 0 is a valid identity because |x| >= 0.
        o_ref[...] = jnp.zeros_like(o_ref)

    ax = jnp.abs(x_ref[...].astype(jnp.float32))
    # (ROW_TILE, LANE) -> (ROW_TILE//8, 8, LANE): whole (8,128) sublane tiles,
    # so the reshape is layout-free and the axis-0 max is elementwise (VPU).
    folded = jnp.max(ax.reshape(ROW_TILE // 8, 8, LANE), axis=0)
    o_ref[...] = jnp.maximum(o_ref[...], folded)


def _max_abs_tiled(x2d):
    rows, cols = x2d.shape
    nblocks = rows // ROW_TILE
    bps = pl.cdiv(nblocks, NUM_SLICES)   # blocks per parallel slice

    def x_map(c, i):
        # Clamp: the last slice may re-read an existing block (idempotent for
        # max) instead of requiring rows % (NUM_SLICES*ROW_TILE) == 0.
        return (jnp.minimum(c * bps + i, nblocks - 1), 0)

    partials = pl.pallas_call(
        _maxabs_kernel,
        out_shape=jax.ShapeDtypeStruct((NUM_SLICES * 8, LANE), jnp.float32),
        grid=(NUM_SLICES, bps),
        in_specs=[pl.BlockSpec((ROW_TILE, cols), x_map)],
        out_specs=pl.BlockSpec((8, LANE), lambda c, i: (c, 0)),
        compiler_params=pltpu.CompilerParams(
            dimension_semantics=("parallel", "arbitrary"),
            vmem_limit_bytes=VMEM_LIMIT),
    )(x2d)
    return jnp.max(partials)


# ---------------------------------------------------------------------------
# Tiled pass 2: elementwise x * scale, scale in SMEM, output aliased onto the
# (padded) input buffer (in-place).
# ---------------------------------------------------------------------------
def _scale_kernel(x_ref, scale_ref, o_ref):
    o_ref[...] = (x_ref[...].astype(jnp.float32) * scale_ref[0]).astype(o_ref.dtype)


def _apply_scale_tiled(x2d, scale):
    rows, cols = x2d.shape
    scale_arr = jnp.asarray(scale, jnp.float32).reshape((1,))
    return pl.pallas_call(
        _scale_kernel,
        out_shape=jax.ShapeDtypeStruct((rows, cols), x2d.dtype),
        grid=(rows // ROW_TILE,),
        in_specs=[pl.BlockSpec((ROW_TILE, cols), lambda i: (i, 0)),
                  pl.BlockSpec(memory_space=pltpu.MemorySpace.SMEM)],
        out_specs=pl.BlockSpec((ROW_TILE, cols), lambda i: (i, 0)),
        input_output_aliases={0: 0},        # in-place
        compiler_params=pltpu.CompilerParams(
            dimension_semantics=("parallel",),
            vmem_limit_bytes=VMEM_LIMIT),
    )(x2d, scale_arr)


def _augment_tiled(x, mul_param):
    L = x.shape[0]
    pad = (-L) % BLOCK_ELEMS
    xp = jnp.pad(x, (0, pad)) if pad else x
    x2d = xp.reshape(-1, LANE)
    max_val = _max_abs_tiled(x2d)
    # TODO(synk): host-side assert(max_val > 0) from PyTorch replaced by a guard.
    safe_max = jnp.where(max_val > 0, max_val, jnp.float32(1.0))
    scale = jnp.where(max_val > 0,
                      jnp.asarray(mul_param, jnp.float32) / safe_max,
                      jnp.float32(1.0))
    y2d = _apply_scale_tiled(x2d, scale)
    y = y2d.reshape(-1)
    return y[:L] if pad else y


# ---------------------------------------------------------------------------
# VolumeAugment forward (JAX / Pallas)
# ---------------------------------------------------------------------------
def volume_augment(x, key,
                   volume_mul_params=VOLUME_MUL_PARAMS,
                   volume_aug_rate=VOLUME_AUG_RATE,
                   fused_max_bytes=FUSED_MAX_BYTES):
    """Mirror of VolumeAugment.forward for a 1-D waveform of any length."""
    assert x.ndim == 1
    volume_mul_params = jnp.asarray(volume_mul_params, jnp.float32)
    k_gate, k_idx = jax.random.split(key)

    # torch.rand(1).item() > volume_aug_rate  -> skip augmentation entirely
    gate = jax.random.uniform(k_gate, ())
    apply_aug = gate <= volume_aug_rate

    # torch.randint(0, len(params), (1,))
    idx = jax.random.randint(k_idx, (), 0, volume_mul_params.shape[0])
    mul_param = volume_mul_params[idx]

    use_fused = x.size * x.dtype.itemsize <= fused_max_bytes
    aug_fn = _augment_fused if use_fused else _augment_tiled

    # Skip all kernel work (and all HBM traffic) on the no-augmentation draw.
    return jax.lax.cond(apply_aug,
                        lambda xx: aug_fn(xx, mul_param),
                        lambda xx: xx,
                        x)


# Pure-JAX reference replaying the same random decisions.
def _volume_augment_ref(x, key,
                        params=VOLUME_MUL_PARAMS, rate=VOLUME_AUG_RATE):
    k_gate, k_idx = jax.random.split(key)
    gate = jax.random.uniform(k_gate, ())
    idx = jax.random.randint(k_idx, (), 0, params.shape[0])
    mul = params[idx]
    mx = jnp.max(jnp.abs(x).astype(jnp.float32))
    y = (x.astype(jnp.float32) / mx * mul).astype(x.dtype)
    return jnp.where(gate <= rate, y, x)


if __name__ == "__main__":
    root = jax.random.PRNGKey(0)
    k1, k2, k3, k4 = jax.random.split(root, 4)

    # ---- small waveform: fused single-shot (VMEM-resident) path ----
    L1 = 16384
    x1 = jax.random.normal(k1, (L1,), dtype=jnp.float32)
    y1 = jax.block_until_ready(_augment_fused(x1, 0.5))
    ref1 = x1 / jnp.max(jnp.abs(x1)) * 0.5
    assert jnp.allclose(y1, ref1, rtol=1e-5, atol=1e-6)

    # ---- longer, odd-length waveform: tiled two-pass path (exercises padding,
    #      the clamped parallel max reduction, and the in-place scale pass) ----
    L2 = 2 * BLOCK_ELEMS + 1000
    x2 = jax.random.normal(k2, (L2,), dtype=jnp.float32)
    y2 = jax.block_until_ready(_augment_tiled(x2, 0.75))
    ref2 = x2 / jnp.max(jnp.abs(x2)) * 0.75
    assert jnp.allclose(y2, ref2, rtol=1e-5, atol=1e-6)

    # ---- full module semantics (random gate + random multiplier choice) ----
    ya = jax.block_until_ready(volume_augment(x1, k3))
    assert jnp.allclose(ya, _volume_augment_ref(x1, k3), rtol=1e-5, atol=1e-6)
    yb = jax.block_until_ready(volume_augment(x2, k4, fused_max_bytes=0))
    assert jnp.allclose(yb, _volume_augment_ref(x2, k4), rtol=1e-5, atol=1e-6)

    print("KERNEL_OK")
</pallas_src>

<mosaic_0001>
module attributes {stable_mosaic.version = 11 : i64} {
  func.func @_fused_kernel(%arg0: memref<16x1024xf32, #tpu.memory_space<vmem>>, %arg1: memref<1xf32, #tpu.memory_space<smem>>, %arg2: memref<16x1024xf32, #tpu.memory_space<vmem>>) attributes {dimension_semantics = [], scalar_prefetch = 0 : i64, scratch_operands = 0 : i64, tpu.core_type = #tpu.core_type<tc>} {
    %c0 = arith.constant 0 : index
    %c0_0 = arith.constant 0 : index
    %0 = vector.load %arg0[%c0, %c0_0] : memref<16x1024xf32, #tpu.memory_space<vmem>>, vector<16x1024xf32>
    %1 = math.absf %0 : vector<16x1024xf32>
    %2 = vector.shape_cast %1 : vector<16x1024xf32> to vector<1x16x1024xf32>
    %cst = arith.constant dense<0xFF800000> : vector<1xf32>
    %3 = vector.multi_reduction <maximumf>, %2, %cst [1, 2] : vector<1x16x1024xf32> to vector<1xf32>
    %4 = vector.shape_cast %3 : vector<1xf32> to vector<1x1x1xf32>
    %5 = vector.extract %4[0, 0, 0] : f32 from vector<1x1x1xf32>
    %cst_1 = arith.constant 0.000000e+00 : f32
    %6 = arith.cmpf ogt, %5, %cst_1 : f32
    %cst_2 = arith.constant 1.000000e+00 : f32
    %7 = arith.select %6, %5, %cst_2 : f32
    %cst_3 = arith.constant 0.000000e+00 : f32
    %8 = arith.cmpf ogt, %5, %cst_3 : f32
    %c0_4 = arith.constant 0 : index
    %9 = memref.load %arg1[%c0_4] : memref<1xf32, #tpu.memory_space<smem>>
    %10 = arith.divf %9, %7 : f32
    %cst_5 = arith.constant 1.000000e+00 : f32
    %11 = arith.select %8, %10, %cst_5 : f32
    %12 = vector.broadcast %11 : f32 to vector<16x1024xf32>
    %13 = arith.mulf %0, %12 : vector<16x1024xf32>
    %c0_6 = arith.constant 0 : index
    %c0_7 = arith.constant 0 : index
    %14 = vector.load %arg2[%c0_6, %c0_7] : memref<16x1024xf32, #tpu.memory_space<vmem>>, vector<16x1024xf32>
    tpu.vector_store %arg2[%c0_6, %c0_7], %13 {strides = array<i32>} : memref<16x1024xf32, #tpu.memory_space<vmem>>, vector<16x1024xf32>,
    return
  }
}

</mosaic_0001>

<llo_original>
// kernel: tpu_custom_call.1
$region0: #{tpu_custom_call.1}
  #allocation0 [shape = 'u32[]', space=smem, size = 0x4, offset = 0x4, fixed_abs, tag = 'smem constant byte address 0x4 - core index']
  #allocation1 [shape = 'u32[144,128]{1,0:T(1,128)}', space=vmem, size = 0x12000, scoped, tag = 'internal scratch']
  #allocation2 [shape = 'f32[1]{0:T(128)S(6)}', space=smem, size = 0x200, scoped, tag = 'scoped memory for tpu_custom_call.1']
  %s0 = inlined_call_operand.hbm [shape: f32[16,1024], index: 0, kind: input, shape index: {}, may-alias: {0,2}]
  %s1 = inlined_call_operand.<no memory space> [shape: f32[1], index: 1, kind: input, shape index: {}]
  %s2 = inlined_call_operand.hbm [shape: f32[16,1024], index: 2, kind: output, shape index: {}, may-alias: {0,2}]
  %s3 = sld [smem:[#allocation0]]
  $region22: #{tpu_custom_call.1} parent=0
    _
  %s5 = ssub.s32 1, %s3
  %s6 = scalar_select 0, %s5, %s3
  %7 = sst [smem:[#allocation2]] %s1
  $region1: #{tpu_custom_call.1} parent=0
    #allocation3 [shape = 'u8[65536]{0}', space=vmem, size = 0x10000, scoped, tag = 'input window, operand 0, single buffered']
    #allocation4 [shape = 's32[1]{0}', space=sflag, size = 0x4, scoped, tag = 'scoped memory for tpu_custom_call.1']
    #allocation5 [shape = 's32[1]{0}', space=sflag, size = 0x4, scoped, tag = 'scoped memory for tpu_custom_call.1']
    #allocation6 [shape = 'u8[65536]{0}', space=vmem, size = 0x10000, scoped, tag = 'output window, operand 0, single buffered']
    %8 = vsyncpa [#allocation4], 0
    %9 = vsyncpa [#allocation5], 0
    // Predicated region
    $region2: #{tpu_custom_call.1} parent=1 // pred_check
      _
    $region3: #{tpu_custom_call.1} parent=1 // pred_check_branch
      %11 = sbr.rel (0) target = $region5
    $region4: #{tpu_custom_call.1} parent=1 // pred_region
      %s13 = ssub.s32 2048, 2048
      %14 = vsyncadd [#allocation4], %s13
      %s15 = sshll.u32 [#allocation3], 4
      %s16 = int_to_ptr.vmem [resolvable:$true] %s15
      %21 = dma.hbm_to_vmem [thread:$0]  %s0, 2048, %s16, [#allocation4], 1024, 1024, 64
    $region5: #{tpu_custom_call.1} parent=1 // pred_fallthru
      _
    // Predicated region
    $region6: #{tpu_custom_call.1} parent=1 // pred_check
      _
    $region7: #{tpu_custom_call.1} parent=1 // pred_check_branch
      %23 = sbr.rel (0) target = $region9
    $region8: #{tpu_custom_call.1} parent=1 // pred_region
      _
    $region9: #{tpu_custom_call.1} parent=1 // pred_fallthru
      _
    // Predicated region
    $region10: #{tpu_custom_call.1} parent=1 // pred_check
      _
    $region11: #{tpu_custom_call.1} parent=1 // pred_check_branch
      %25 = sbr.rel (0) target = $region13
    $region12: #{tpu_custom_call.1} parent=1 // pred_region
      %26 = dma.done [#allocation4], 2048
    $region13: #{tpu_custom_call.1} parent=1 // pred_fallthru
      _
    %v27 = vld [vmem:[#allocation3] sm:$0xff]
    %v28 = vld [vmem:[#allocation3 + $0x8] sm:$0xff]
    %v29 = vld [vmem:[#allocation3 + $0x10] sm:$0xff]
    %v30 = vld [vmem:[#allocation3 + $0x18] sm:$0xff]
    %v31 = vld [vmem:[#allocation3 + $0x20] sm:$0xff]
    %v32 = vld [vmem:[#allocation3 + $0x28] sm:$0xff]
    %v33 = vld [vmem:[#allocation3 + $0x30] sm:$0xff]
    %v34 = vld [vmem:[#allocation3 + $0x38] sm:$0xff]
    %v35 = vld [vmem:[#allocation3 + $0x40] sm:$0xff]
    %v36 = vld [vmem:[#allocation3 + $0x48] sm:$0xff]
    %v37 = vld [vmem:[#allocation3 + $0x50] sm:$0xff]
    %v38 = vld [vmem:[#allocation3 + $0x58] sm:$0xff]
    %v39 = vld [vmem:[#allocation3 + $0x60] sm:$0xff]
    %v40 = vld [vmem:[#allocation3 + $0x68] sm:$0xff]
    %v41 = vld [vmem:[#allocation3 + $0x70] sm:$0xff]
    %v42 = vld [vmem:[#allocation3 + $0x78] sm:$0xff]
    %v43 = vand.u32 2147483647, %v27
    %v44 = vand.u32 2147483647, %v28
    %v45 = vand.u32 2147483647, %v29
    %v46 = vand.u32 2147483647, %v30
    %v47 = vand.u32 2147483647, %v31
    %v48 = vand.u32 2147483647, %v32
    %v49 = vand.u32 2147483647, %v33
    %v50 = vand.u32 2147483647, %v34
    %v51 = vand.u32 2147483647, %v35
    %v52 = vand.u32 2147483647, %v36
    %v53 = vand.u32 2147483647, %v37
    %v54 = vand.u32 2147483647, %v38
    %v55 = vand.u32 2147483647, %v39
    %v56 = vand.u32 2147483647, %v40
    %v57 = vand.u32 2147483647, %v41
    %v58 = vand.u32 2147483647, %v42
    %v59 = vmax.f32 %v43, %v47
    %v60 = vmax.f32 %v44, %v48
    %v61 = vmax.f32 %v45, %v49
    %v62 = vmax.f32 %v46, %v50
    %v63 = vmax.f32 %v59, %v51
    %v64 = vmax.f32 %v60, %v52
    %v65 = vmax.f32 %v61, %v53
    %v66 = vmax.f32 %v62, %v54
    %v67 = vmax.f32 %v63, %v55
    %v68 = vmax.f32 %v64, %v56
    %v69 = vmax.f32 %v65, %v57
    %v70 = vmax.f32 %v66, %v58
    %v71 = vmax.f32 %v67, %v68
    %v72 = vmax.f32 %v69, %v70
    %v73 = vmax.f32 %v71, %v72
    %74 = vmax.xlane.f32.xlu0 %v73
    %v75 = vpop.xlane.xlu0 %74
    %v76 = vrot.slane %v75, 4
    %v77 = vmax.f32 %v75, %v76
    %v78 = vrot.slane %v77, 2
    %v79 = vmax.f32 %v77, %v78
    %v80 = vrot.slane %v79, 1
    %v81 = vmax.f32 %v79, %v80
    %s82 = vtos %v81
    %p83 = scmp.gt.f32.partialorder %s82, 0.0
    %s84 = scalar_select %p83, %s82, 1.0
    %s85 = sld [smem:[#allocation2]]
    %v86 = vstv %s84
    %v87 = vrcp.pop %v86
    %s88 = vtos %v87
    %s89 = smul.f32 %s85, %s88
    %s90 = scalar_select %p83, %s89, 1.0
    %v91 = vstv %s90
    %v92 = vmul.f32 %v27, %v91
    %v93 = vmul.f32 %v28, %v91
    %v94 = vmul.f32 %v29, %v91
    %v95 = vmul.f32 %v30, %v91
    %v96 = vmul.f32 %v31, %v91
    %v97 = vmul.f32 %v32, %v91
    %v98 = vmul.f32 %v33, %v91
    %v99 = vmul.f32 %v34, %v91
    %v100 = vmul.f32 %v35, %v91
    %v101 = vmul.f32 %v36, %v91
    %v102 = vmul.f32 %v37, %v91
    %v103 = vmul.f32 %v38, %v91
    %v104 = vmul.f32 %v39, %v91
    %v105 = vmul.f32 %v40, %v91
    %v106 = vmul.f32 %v41, %v91
    %v107 = vmul.f32 %v42, %v91
    %108 = vst [vmem:[#allocation6] sm:$0xff] %v92
    %109 = vst [vmem:[#allocation6 + $0x8] sm:$0xff] %v93
    %110 = vst [vmem:[#allocation6 + $0x10] sm:$0xff] %v94
    %111 = vst [vmem:[#allocation6 + $0x18] sm:$0xff] %v95
    %112 = vst [vmem:[#allocation6 + $0x20] sm:$0xff] %v96
    %113 = vst [vmem:[#allocation6 + $0x28] sm:$0xff] %v97
    %114 = vst [vmem:[#allocation6 + $0x30] sm:$0xff] %v98
    %115 = vst [vmem:[#allocation6 + $0x38] sm:$0xff] %v99
    %116 = vst [vmem:[#allocation6 + $0x40] sm:$0xff] %v100
    %117 = vst [vmem:[#allocation6 + $0x48] sm:$0xff] %v101
    %118 = vst [vmem:[#allocation6 + $0x50] sm:$0xff] %v102
    %119 = vst [vmem:[#allocation6 + $0x58] sm:$0xff] %v103
    %120 = vst [vmem:[#allocation6 + $0x60] sm:$0xff] %v104
    %121 = vst [vmem:[#allocation6 + $0x68] sm:$0xff] %v105
    %122 = vst [vmem:[#allocation6 + $0x70] sm:$0xff] %v106
    %123 = vst [vmem:[#allocation6 + $0x78] sm:$0xff] %v107
    // Predicated region
    $region14: #{tpu_custom_call.1} parent=1 // pred_check
      _
    $region15: #{tpu_custom_call.1} parent=1 // pred_check_branch
      %125 = sbr.rel (0) target = $region17
    $region16: #{tpu_custom_call.1} parent=1 // pred_region
      %s127 = ssub.s32 2048, 2048
      %128 = vsyncadd [#allocation5], %s127
      %s129 = sshll.u32 [#allocation6], 4
      %s130 = int_to_ptr.vmem [resolvable:$true] %s129
      %135 = dma.vmem_to_hbm [thread:$0]  %s130, 2048, %s2, [#allocation5], 1024, 1024, 64
    $region17: #{tpu_custom_call.1} parent=1 // pred_fallthru
      _
    // Predicated region
    $region18: #{tpu_custom_call.1} parent=1 // pred_check
      _
    $region19: #{tpu_custom_call.1} parent=1 // pred_check_branch
      %137 = sbr.rel (0) target = $region21
    $region20: #{tpu_custom_call.1} parent=1 // pred_region
      %138 = dma.done [#allocation5], 2048
    $region21: #{tpu_custom_call.1} parent=1 // pred_fallthru
      _
    %139 = vsyncpa [#allocation4], 1
    %140 = vsyncpa [#allocation5], 1

</llo_original>
